<compile_context>
chip_gen: v5e
topology: v5e:2x2
jax: 0.10.0
libtpu: 0.0.40
codegen_flags: <defaults>
</compile_context>

<pallas_src>
import functools
from typing import Optional

import jax
import jax.numpy as jnp
from jax.experimental import pallas as pl
from jax.experimental.pallas import tpu as pltpu


def make_divisible(value: float, divisor: int, min_value: Optional[float] = None,
                   round_down_protect: bool = True) -> int:
    if min_value is None:
        min_value = divisor
    new_value = max(min_value, int(value + divisor / 2) // divisor * divisor)
    if round_down_protect and new_value < 0.9 * value:
        new_value += divisor
    return int(new_value)


# -----------------------------------------------------------------------------
# In-kernel helper: depthwise 3x3 (stride 1, zero padding) on the
# lane-interleaved (H, W*C) layout.
#   * row shift (dy): sublane roll + precomputed (H,1) float row mask (shared
#     by both convs, passed in by the caller).
#   * column shift (dx): lane roll by dx*C; the column-border zeroing is folded
#     into the weight tiles on the host, so no per-tap select is needed here.
# w_t[k] = tap-k weight * BN scale, tiled W times, border lanes pre-zeroed.
# -----------------------------------------------------------------------------
def _dw3x3_interleaved(x, w_t, C, H, W, m_lo, m_hi):
    n = W * C
    acc = x * w_t[4:5, :]                       # center tap (dy=0, dx=0)
    for dy in (-1, 0, 1):
        if dy == 0:
            xr = x
        else:
            xr = pltpu.roll(x, (-dy) % H, axis=0)
            xr = xr * (m_hi if dy == 1 else m_lo)   # zero-padding at top/bottom
        for dx in (-1, 0, 1):
            if dy == 0 and dx == 0:
                continue
            k = 3 * (dy + 1) + (dx + 1)
            t = xr if dx == 0 else pltpu.roll(xr, (-dx * C) % n, axis=1)
            acc = acc + t * w_t[k:k + 1, :]
    return acc


# -----------------------------------------------------------------------------
# Fused UIB kernel (one batch sample per grid step)
# -----------------------------------------------------------------------------
def _uib_fused_kernel(H, W, Cin, Cexp, Cout,
                      x_ref,      # (1, H, W*Cin)  lane-interleaved NHWC input
                      wdw1_ref,   # (9, W*Cin)     dw1 * BN1 scale, borders folded
                      b1_ref,     # (1, W*Cin)     BN1 bias (tiled)
                      p1_ref,     # (W*Cin, W)     block-diag rank-1 reduce
                      e1_ref,     # (W, W*Cexp)    block-diag expand * BN2 scale
                      b2_ref,     # (1, W*Cexp)    BN2 bias (tiled)
                      wdw2_ref,   # (9, W*Cexp)    dw2 * BN3 scale, borders folded
                      b3_ref,     # (1, W*Cexp)    BN3 bias (tiled)
                      p2_ref,     # (W*Cexp, W)    block-diag rank-1 reduce
                      e2_ref,     # (W, W*Cout)    block-diag expand * BN4 scale
                      b4_ref,     # (1, W*Cout)    BN4 bias (tiled)
                      o_ref):     # (1, H, W*Cout)
    x = x_ref[0].astype(jnp.float32)

    # Row-border masks: computed once, shared by both depthwise convs.
    row = jax.lax.broadcasted_iota(jnp.int32, (H, 1), 0)
    m_lo = (row >= 1).astype(jnp.float32)        # valid when pulling from row-1
    m_hi = (row < H - 1).astype(jnp.float32)     # valid when pulling from row+1

    # ---- start depthwise 3x3 + folded BN (no activation) ----
    y = _dw3x3_interleaved(x, wdw1_ref[...], Cin, H, W, m_lo, m_hi) + b1_ref[...]

    # ---- expand: rank-1 pointwise as two skinny MXU matmuls + BN bias + ReLU6 ----
    r = jnp.dot(y, p1_ref[...], preferred_element_type=jnp.float32)        # (H, W)
    y = jnp.dot(r, e1_ref[...], preferred_element_type=jnp.float32) + b2_ref[...]
    y = jnp.clip(y, 0.0, 6.0)

    # ---- middle depthwise 3x3 + folded BN + ReLU6 ----
    y = _dw3x3_interleaved(y, wdw2_ref[...], Cexp, H, W, m_lo, m_hi) + b3_ref[...]
    y = jnp.clip(y, 0.0, 6.0)

    # ---- project: rank-1 pointwise as two skinny MXU matmuls + BN bias (no act) ----
    r = jnp.dot(y, p2_ref[...], preferred_element_type=jnp.float32)        # (H, W)
    z = jnp.dot(r, e2_ref[...], preferred_element_type=jnp.float32) + b4_ref[...]

    o_ref[0] = z.astype(o_ref.dtype)


def uib_forward_interleaved(x_il, kp, Cin, cexp, cout, H, W):
    """Core entry: lane-interleaved (N, H, W*Cin) in / (N, H, W*Cout) out."""
    N = x_il.shape[0]
    kern = functools.partial(_uib_fused_kernel, H, W, Cin, cexp, cout)
    return pl.pallas_call(
        kern,
        out_shape=jax.ShapeDtypeStruct((N, H, W * cout), jnp.float32),
        grid=(N,),
        in_specs=[
            pl.BlockSpec((1, H, W * Cin), lambda b: (b, 0, 0)),
            pl.BlockSpec((9, W * Cin), lambda b: (0, 0)),
            pl.BlockSpec((1, W * Cin), lambda b: (0, 0)),
            pl.BlockSpec((W * Cin, W), lambda b: (0, 0)),
            pl.BlockSpec((W, W * cexp), lambda b: (0, 0)),
            pl.BlockSpec((1, W * cexp), lambda b: (0, 0)),
            pl.BlockSpec((9, W * cexp), lambda b: (0, 0)),
            pl.BlockSpec((1, W * cexp), lambda b: (0, 0)),
            pl.BlockSpec((W * cexp, W), lambda b: (0, 0)),
            pl.BlockSpec((W, W * cout), lambda b: (0, 0)),
            pl.BlockSpec((1, W * cout), lambda b: (0, 0)),
        ],
        out_specs=pl.BlockSpec((1, H, W * cout), lambda b: (b, 0, 0)),
        compiler_params=pltpu.CompilerParams(dimension_semantics=("parallel",)),
    )(x_il, kp["wdw1_t"], kp["b1_t"], kp["p1"], kp["e1"], kp["b2_t"],
      kp["wdw2_t"], kp["b3_t"], kp["p2"], kp["e2"], kp["b4_t"])


def uib_forward(x_nchw, kp, cexp, cout):
    """NCHW adapter matching the PyTorch module (inference).  In a real model,
    chain blocks through uib_forward_interleaved and skip these transposes."""
    N, Cin, H, W = x_nchw.shape
    x_il = jnp.transpose(x_nchw, (0, 2, 3, 1)).reshape(N, H, W * Cin).astype(jnp.float32)
    out_il = uib_forward_interleaved(x_il, kp, Cin, cexp, cout, H, W)
    return out_il.reshape(N, H, W, cout).transpose(0, 3, 1, 2)


# -----------------------------------------------------------------------------
# Host-side parameter construction / folding (glue, weight-sized work only)
# -----------------------------------------------------------------------------
def fold_bn(gamma, beta, mean, var, eps=1e-5):
    scale = gamma / jnp.sqrt(var + eps)
    return scale, beta - mean * scale


def make_raw_params(key, inp, oup, expand_ratio=1):
    """Module-like raw parameters (conv weights + BN stats)."""
    cexp = make_divisible(inp * expand_ratio, 8)
    ks = jax.random.split(key, 10)

    def bn_params(k, c):
        k1, k2, k3, k4 = jax.random.split(k, 4)
        return (jax.random.uniform(k1, (c,), jnp.float32, 0.5, 1.5),    # gamma
                jax.random.normal(k2, (c,), jnp.float32) * 0.1,         # beta
                jax.random.normal(k3, (c,), jnp.float32) * 0.1,         # running mean
                jax.random.uniform(k4, (c,), jnp.float32, 0.5, 1.5))    # running var

    raw = dict(
        wdw1=jax.random.normal(ks[0], (3, 3, inp), jnp.float32) * 0.3,   # start dw
        bn1=bn_params(ks[1], inp),
        wr1=jax.random.normal(ks[2], (inp,), jnp.float32) * 0.3,         # 1x1 reduce (rank 1)
        we1=jax.random.normal(ks[3], (cexp,), jnp.float32) * 0.3,        # 1x1 expand
        bn2=bn_params(ks[4], cexp),
        wdw2=jax.random.normal(ks[5], (3, 3, cexp), jnp.float32) * 0.3,  # middle dw
        bn3=bn_params(ks[6], cexp),
        wr2=jax.random.normal(ks[7], (cexp,), jnp.float32) * 0.3,        # proj reduce
        we2=jax.random.normal(ks[8], (oup,), jnp.float32) * 0.3,         # proj expand
        bn4=bn_params(ks[9], oup),
    )
    return raw, cexp


def prepare_kernel_params(raw, inp, cexp, oup, W):
    s1, b1 = fold_bn(*raw["bn1"])
    s2, b2 = fold_bn(*raw["bn2"])
    s3, b3 = fold_bn(*raw["bn3"])
    s4, b4 = fold_bn(*raw["bn4"])
    eye_w = jnp.eye(W, dtype=jnp.float32)

    def dw_tile(w33, scale, C):
        # (3,3,C) -> (9, W*C): BN scale folded in, tiled W times along lanes,
        # and the column-border zero-padding folded into the weights
        # (dx=+1 taps zeroed at col==W-1, dx=-1 taps zeroed at col==0).
        wt = jnp.tile(w33.reshape(9, C) * scale[None, :], (1, W))
        col = jnp.arange(W * C) // C
        masks = []
        for dy in (-1, 0, 1):
            for dx in (-1, 0, 1):
                if dx == 1:
                    m = col < W - 1
                elif dx == -1:
                    m = col >= 1
                else:
                    m = jnp.ones((W * C,), bool)
                masks.append(m)
        return wt * jnp.stack(masks).astype(jnp.float32)

    return dict(
        wdw1_t=dw_tile(raw["wdw1"], s1, inp),
        b1_t=jnp.tile(b1, W)[None, :],
        # factorized rank-1 pointwise: reduce (W*Cin, W), expand*BNscale (W, W*Cexp)
        p1=jnp.kron(eye_w, raw["wr1"][:, None]),
        e1=jnp.kron(eye_w, (raw["we1"] * s2)[None, :]),
        b2_t=jnp.tile(b2, W)[None, :],
        wdw2_t=dw_tile(raw["wdw2"], s3, cexp),
        b3_t=jnp.tile(b3, W)[None, :],
        p2=jnp.kron(eye_w, raw["wr2"][:, None]),
        e2=jnp.kron(eye_w, (raw["we2"] * s4)[None, :]),
        b4_t=jnp.tile(b4, W)[None, :],
    )


# -----------------------------------------------------------------------------
# Pure-JAX reference (mirrors the PyTorch module op-for-op; correctness only)
# -----------------------------------------------------------------------------
def _bn_ref(x, bn, eps=1e-5):
    g, b, m, v = bn
    return (x - m) * (g / jnp.sqrt(v + eps)) + b


def _dw3x3_ref(x, w33):                     # x: (N,H,W,C), w33: (3,3,C)
    N, H, W, C = x.shape
    xp = jnp.pad(x, ((0, 0), (1, 1), (1, 1), (0, 0)))
    out = jnp.zeros_like(x)
    for dy in range(3):
        for dx in range(3):
            out = out + xp[:, dy:dy + H, dx:dx + W, :] * w33[dy, dx]
    return out


def uib_forward_ref(x_nchw, raw):
    x = jnp.transpose(x_nchw, (0, 2, 3, 1)).astype(jnp.float32)
    y = _bn_ref(_dw3x3_ref(x, raw["wdw1"]), raw["bn1"])                 # start dw, no act
    r = jnp.sum(y * raw["wr1"], axis=-1, keepdims=True)                 # rank-1 reduce
    y = jnp.clip(_bn_ref(r * raw["we1"], raw["bn2"]), 0.0, 6.0)         # expand + BN + ReLU6
    y = jnp.clip(_bn_ref(_dw3x3_ref(y, raw["wdw2"]), raw["bn3"]), 0.0, 6.0)
    r = jnp.sum(y * raw["wr2"], axis=-1, keepdims=True)
    y = _bn_ref(r * raw["we2"], raw["bn4"])                             # proj, no act
    return jnp.transpose(y, (0, 3, 1, 2))


if __name__ == "__main__":
    N, Cin, H, W = 2, 4, 16, 16
    Coup = 8

    key = jax.random.PRNGKey(0)
    kx, kparams_key = jax.random.split(key)
    x = jax.random.normal(kx, (N, Cin, H, W), jnp.float32)   # NCHW, like PyTorch

    raw, cexp = make_raw_params(kparams_key, Cin, Coup, expand_ratio=1)
    kparams = prepare_kernel_params(raw, Cin, cexp, Coup, W)

    out = jax.block_until_ready(uib_forward(x, kparams, cexp, Coup))
    ref = jax.block_until_ready(uib_forward_ref(x, raw))

    assert out.shape == (N, Coup, H, W), out.shape
    max_err = float(jnp.max(jnp.abs(out - ref)))
    assert max_err < 1e-3, max_err

    print("KERNEL_OK")
</pallas_src>

<mosaic_0001>
module attributes {stable_mosaic.version = 11 : i64} {
  func.func @_uib_fused_kernel(%arg0: i32, %arg1: memref<1x16x64xf32, #tpu.memory_space<vmem>>, %arg2: memref<9x64xf32, #tpu.memory_space<vmem>>, %arg3: memref<1x64xf32, #tpu.memory_space<vmem>>, %arg4: memref<64x16xf32, #tpu.memory_space<vmem>>, %arg5: memref<16x128xf32, #tpu.memory_space<vmem>>, %arg6: memref<1x128xf32, #tpu.memory_space<vmem>>, %arg7: memref<9x128xf32, #tpu.memory_space<vmem>>, %arg8: memref<1x128xf32, #tpu.memory_space<vmem>>, %arg9: memref<128x16xf32, #tpu.memory_space<vmem>>, %arg10: memref<16x128xf32, #tpu.memory_space<vmem>>, %arg11: memref<1x128xf32, #tpu.memory_space<vmem>>, %arg12: memref<1x16x128xf32, #tpu.memory_space<vmem>>) attributes {dimension_semantics = [#tpu.dimension_semantics<parallel>], iteration_bounds = array<i64: 2>, scalar_prefetch = 0 : i64, scratch_operands = 0 : i64, tpu.core_type = #tpu.core_type<tc>, window_params = [{transform_indices = @transform_0, window_bounds = array<i64: 1, 16, 64>}, {pipeline_mode = #tpu.pipeline_mode<synchronous>, transform_indices = @transform_1, window_bounds = array<i64: 9, 64>}, {pipeline_mode = #tpu.pipeline_mode<synchronous>, transform_indices = @transform_2, window_bounds = array<i64: 1, 64>}, {pipeline_mode = #tpu.pipeline_mode<synchronous>, transform_indices = @transform_3, window_bounds = array<i64: 64, 16>}, {pipeline_mode = #tpu.pipeline_mode<synchronous>, transform_indices = @transform_4, window_bounds = array<i64: 16, 128>}, {pipeline_mode = #tpu.pipeline_mode<synchronous>, transform_indices = @transform_5, window_bounds = array<i64: 1, 128>}, {pipeline_mode = #tpu.pipeline_mode<synchronous>, transform_indices = @transform_6, window_bounds = array<i64: 9, 128>}, {pipeline_mode = #tpu.pipeline_mode<synchronous>, transform_indices = @transform_7, window_bounds = array<i64: 1, 128>}, {pipeline_mode = #tpu.pipeline_mode<synchronous>, transform_indices = @transform_8, window_bounds = array<i64: 128, 16>}, {pipeline_mode = #tpu.pipeline_mode<synchronous>, transform_indices = @transform_9, window_bounds = array<i64: 16, 128>}, {pipeline_mode = #tpu.pipeline_mode<synchronous>, transform_indices = @transform_10, window_bounds = array<i64: 1, 128>}, {transform_indices = @transform_11, window_bounds = array<i64: 1, 16, 128>}]} {
    %c0 = arith.constant 0 : index
    %c0_0 = arith.constant 0 : index
    %c0_1 = arith.constant 0 : index
    %0 = vector.load %arg1[%c0, %c0_0, %c0_1] : memref<1x16x64xf32, #tpu.memory_space<vmem>>, vector<1x16x64xf32>
    %1 = vector.shape_cast %0 : vector<1x16x64xf32> to vector<16x64xf32>
    %2 = tpu.iota {dimensions = array<i32: 0>} : vector<16x1xi32>
    %c1_i32 = arith.constant 1 : i32
    %3 = vector.broadcast %c1_i32 : i32 to vector<16x1xi32>
    %4 = arith.cmpi sge, %2, %3 : vector<16x1xi32>
    %5 = arith.extui %4 : vector<16x1xi1> to vector<16x1xi32>
    %6 = arith.sitofp %5 : vector<16x1xi32> to vector<16x1xf32>
    %c15_i32 = arith.constant 15 : i32
    %7 = vector.broadcast %c15_i32 : i32 to vector<16x1xi32>
    %8 = arith.cmpi slt, %2, %7 : vector<16x1xi32>
    %9 = arith.extui %8 : vector<16x1xi1> to vector<16x1xi32>
    %10 = arith.sitofp %9 : vector<16x1xi32> to vector<16x1xf32>
    %c0_2 = arith.constant 0 : index
    %c0_3 = arith.constant 0 : index
    %11 = vector.load %arg2[%c0_2, %c0_3] : memref<9x64xf32, #tpu.memory_space<vmem>>, vector<9x64xf32>
    %12 = vector.extract_strided_slice %11 {offsets = [4, 0], sizes = [1, 64], strides = [1, 1]} : vector<9x64xf32> to vector<1x64xf32>
    %13 = vector.broadcast %12 : vector<1x64xf32> to vector<16x64xf32>
    %14 = arith.mulf %1, %13 : vector<16x64xf32>
    %c1_i32_4 = arith.constant 1 : i32
    %15 = tpu.dynamic_rotate %1 by %c1_i32_4 dim 0 : vector<16x64xf32>, i32 -> vector<16x64xf32>
    %16 = vector.broadcast %6 : vector<16x1xf32> to vector<16x64xf32>
    %17 = arith.mulf %15, %16 : vector<16x64xf32>
    %c4_i32 = arith.constant 4 : i32
    %18 = tpu.dynamic_rotate %17 by %c4_i32 dim 1 : vector<16x64xf32>, i32 -> vector<16x64xf32>
    %19 = vector.extract_strided_slice %11 {offsets = [0, 0], sizes = [1, 64], strides = [1, 1]} : vector<9x64xf32> to vector<1x64xf32>
    %20 = vector.broadcast %19 : vector<1x64xf32> to vector<16x64xf32>
    %21 = arith.mulf %18, %20 : vector<16x64xf32>
    %22 = arith.addf %14, %21 : vector<16x64xf32>
    %23 = vector.extract_strided_slice %11 {offsets = [1, 0], sizes = [1, 64], strides = [1, 1]} : vector<9x64xf32> to vector<1x64xf32>
    %24 = vector.broadcast %23 : vector<1x64xf32> to vector<16x64xf32>
    %25 = arith.mulf %17, %24 : vector<16x64xf32>
    %26 = arith.addf %22, %25 : vector<16x64xf32>
    %c60_i32 = arith.constant 60 : i32
    %27 = tpu.dynamic_rotate %17 by %c60_i32 dim 1 : vector<16x64xf32>, i32 -> vector<16x64xf32>
    %28 = vector.extract_strided_slice %11 {offsets = [2, 0], sizes = [1, 64], strides = [1, 1]} : vector<9x64xf32> to vector<1x64xf32>
    %29 = vector.broadcast %28 : vector<1x64xf32> to vector<16x64xf32>
    %30 = arith.mulf %27, %29 : vector<16x64xf32>
    %31 = arith.addf %26, %30 : vector<16x64xf32>
    %c4_i32_5 = arith.constant 4 : i32
    %32 = tpu.dynamic_rotate %1 by %c4_i32_5 dim 1 : vector<16x64xf32>, i32 -> vector<16x64xf32>
    %33 = vector.extract_strided_slice %11 {offsets = [3, 0], sizes = [1, 64], strides = [1, 1]} : vector<9x64xf32> to vector<1x64xf32>
    %34 = vector.broadcast %33 : vector<1x64xf32> to vector<16x64xf32>
    %35 = arith.mulf %32, %34 : vector<16x64xf32>
    %36 = arith.addf %31, %35 : vector<16x64xf32>
    %c60_i32_6 = arith.constant 60 : i32
    %37 = tpu.dynamic_rotate %1 by %c60_i32_6 dim 1 : vector<16x64xf32>, i32 -> vector<16x64xf32>
    %38 = vector.extract_strided_slice %11 {offsets = [5, 0], sizes = [1, 64], strides = [1, 1]} : vector<9x64xf32> to vector<1x64xf32>
    %39 = vector.broadcast %38 : vector<1x64xf32> to vector<16x64xf32>
    %40 = arith.mulf %37, %39 : vector<16x64xf32>
    %41 = arith.addf %36, %40 : vector<16x64xf32>
    %c15_i32_7 = arith.constant 15 : i32
    %42 = tpu.dynamic_rotate %1 by %c15_i32_7 dim 0 : vector<16x64xf32>, i32 -> vector<16x64xf32>
    %43 = vector.broadcast %10 : vector<16x1xf32> to vector<16x64xf32>
    %44 = arith.mulf %42, %43 : vector<16x64xf32>
    %c4_i32_8 = arith.constant 4 : i32
    %45 = tpu.dynamic_rotate %44 by %c4_i32_8 dim 1 : vector<16x64xf32>, i32 -> vector<16x64xf32>
    %46 = vector.extract_strided_slice %11 {offsets = [6, 0], sizes = [1, 64], strides = [1, 1]} : vector<9x64xf32> to vector<1x64xf32>
    %47 = vector.broadcast %46 : vector<1x64xf32> to vector<16x64xf32>
    %48 = arith.mulf %45, %47 : vector<16x64xf32>
    %49 = arith.addf %41, %48 : vector<16x64xf32>
    %50 = vector.extract_strided_slice %11 {offsets = [7, 0], sizes = [1, 64], strides = [1, 1]} : vector<9x64xf32> to vector<1x64xf32>
    %51 = vector.broadcast %50 : vector<1x64xf32> to vector<16x64xf32>
    %52 = arith.mulf %44, %51 : vector<16x64xf32>
    %53 = arith.addf %49, %52 : vector<16x64xf32>
    %c60_i32_9 = arith.constant 60 : i32
    %54 = tpu.dynamic_rotate %44 by %c60_i32_9 dim 1 : vector<16x64xf32>, i32 -> vector<16x64xf32>
    %55 = vector.extract_strided_slice %11 {offsets = [8, 0], sizes = [1, 64], strides = [1, 1]} : vector<9x64xf32> to vector<1x64xf32>
    %56 = vector.broadcast %55 : vector<1x64xf32> to vector<16x64xf32>
    %57 = arith.mulf %54, %56 : vector<16x64xf32>
    %58 = arith.addf %53, %57 : vector<16x64xf32>
    %c0_10 = arith.constant 0 : index
    %c0_11 = arith.constant 0 : index
    %59 = vector.load %arg3[%c0_10, %c0_11] : memref<1x64xf32, #tpu.memory_space<vmem>>, vector<1x64xf32>
    %60 = vector.broadcast %59 : vector<1x64xf32> to vector<16x64xf32>
    %61 = arith.addf %58, %60 : vector<16x64xf32>
    %c0_12 = arith.constant 0 : index
    %c0_13 = arith.constant 0 : index
    %62 = vector.load %arg4[%c0_12, %c0_13] : memref<64x16xf32, #tpu.memory_space<vmem>>, vector<64x16xf32>
    %cst = arith.constant dense<0.000000e+00> : vector<16x16xf32>
    %63 = tpu.matmul %61, %62, %cst {dimension_numbers = #tpu.dot_dimension_numbers<[1], [0], [0], [1], [0, 0, 1, 1], [], []>} : vector<16x64xf32>, vector<64x16xf32>, vector<16x16xf32> -> vector<16x16xf32>
    %c0_14 = arith.constant 0 : index
    %c0_15 = arith.constant 0 : index
    %64 = vector.load %arg5[%c0_14, %c0_15] : memref<16x128xf32, #tpu.memory_space<vmem>>, vector<16x128xf32>
    %cst_16 = arith.constant dense<0.000000e+00> : vector<16x128xf32>
    %65 = tpu.matmul %63, %64, %cst_16 {dimension_numbers = #tpu.dot_dimension_numbers<[1], [0], [0], [1], [0, 0, 1, 1], [], []>} : vector<16x16xf32>, vector<16x128xf32>, vector<16x128xf32> -> vector<16x128xf32>
    %c0_17 = arith.constant 0 : index
    %c0_18 = arith.constant 0 : index
    %66 = vector.load %arg6[%c0_17, %c0_18] : memref<1x128xf32, #tpu.memory_space<vmem>>, vector<1x128xf32>
    %67 = vector.broadcast %66 : vector<1x128xf32> to vector<16x128xf32>
    %68 = arith.addf %65, %67 : vector<16x128xf32>
    %cst_19 = arith.constant 0.000000e+00 : f32
    %cst_20 = arith.constant 6.000000e+00 : f32
    %69 = vector.broadcast %cst_19 : f32 to vector<16x128xf32>
    %70 = arith.maximumf %69, %68 : vector<16x128xf32>
    %71 = vector.broadcast %cst_20 : f32 to vector<16x128xf32>
    %72 = arith.minimumf %71, %70 : vector<16x128xf32>
    %c0_21 = arith.constant 0 : index
    %c0_22 = arith.constant 0 : index
    %73 = vector.load %arg7[%c0_21, %c0_22] : memref<9x128xf32, #tpu.memory_space<vmem>>, vector<9x128xf32>
    %74 = vector.extract_strided_slice %73 {offsets = [4, 0], sizes = [1, 128], strides = [1, 1]} : vector<9x128xf32> to vector<1x128xf32>
    %75 = vector.broadcast %74 : vector<1x128xf32> to vector<16x128xf32>
    %76 = arith.mulf %72, %75 : vector<16x128xf32>
    %c1_i32_23 = arith.constant 1 : i32
    %77 = tpu.dynamic_rotate %72 by %c1_i32_23 dim 0 : vector<16x128xf32>, i32 -> vector<16x128xf32>
    %78 = vector.broadcast %6 : vector<16x1xf32> to vector<16x128xf32>
    %79 = arith.mulf %77, %78 : vector<16x128xf32>
    %c8_i32 = arith.constant 8 : i32
    %80 = tpu.dynamic_rotate %79 by %c8_i32 dim 1 : vector<16x128xf32>, i32 -> vector<16x128xf32>
    %81 = vector.extract_strided_slice %73 {offsets = [0, 0], sizes = [1, 128], strides = [1, 1]} : vector<9x128xf32> to vector<1x128xf32>
    %82 = vector.broadcast %81 : vector<1x128xf32> to vector<16x128xf32>
    %83 = arith.mulf %80, %82 : vector<16x128xf32>
    %84 = arith.addf %76, %83 : vector<16x128xf32>
    %85 = vector.extract_strided_slice %73 {offsets = [1, 0], sizes = [1, 128], strides = [1, 1]} : vector<9x128xf32> to vector<1x128xf32>
    %86 = vector.broadcast %85 : vector<1x128xf32> to vector<16x128xf32>
    %87 = arith.mulf %79, %86 : vector<16x128xf32>
    %88 = arith.addf %84, %87 : vector<16x128xf32>
    %c120_i32 = arith.constant 120 : i32
    %89 = tpu.dynamic_rotate %79 by %c120_i32 dim 1 : vector<16x128xf32>, i32 -> vector<16x128xf32>
    %90 = vector.extract_strided_slice %73 {offsets = [2, 0], sizes = [1, 128], strides = [1, 1]} : vector<9x128xf32> to vector<1x128xf32>
    %91 = vector.broadcast %90 : vector<1x128xf32> to vector<16x128xf32>
    %92 = arith.mulf %89, %91 : vector<16x128xf32>
    %93 = arith.addf %88, %92 : vector<16x128xf32>
    %c8_i32_24 = arith.constant 8 : i32
    %94 = tpu.dynamic_rotate %72 by %c8_i32_24 dim 1 : vector<16x128xf32>, i32 -> vector<16x128xf32>
    %95 = vector.extract_strided_slice %73 {offsets = [3, 0], sizes = [1, 128], strides = [1, 1]} : vector<9x128xf32> to vector<1x128xf32>
    %96 = vector.broadcast %95 : vector<1x128xf32> to vector<16x128xf32>
    %97 = arith.mulf %94, %96 : vector<16x128xf32>
    %98 = arith.addf %93, %97 : vector<16x128xf32>
    %c120_i32_25 = arith.constant 120 : i32
    %99 = tpu.dynamic_rotate %72 by %c120_i32_25 dim 1 : vector<16x128xf32>, i32 -> vector<16x128xf32>
    %100 = vector.extract_strided_slice %73 {offsets = [5, 0], sizes = [1, 128], strides = [1, 1]} : vector<9x128xf32> to vector<1x128xf32>
    %101 = vector.broadcast %100 : vector<1x128xf32> to vector<16x128xf32>
    %102 = arith.mulf %99, %101 : vector<16x128xf32>
    %103 = arith.addf %98, %102 : vector<16x128xf32>
    %c15_i32_26 = arith.constant 15 : i32
    %104 = tpu.dynamic_rotate %72 by %c15_i32_26 dim 0 : vector<16x128xf32>, i32 -> vector<16x128xf32>
    %105 = vector.broadcast %10 : vector<16x1xf32> to vector<16x128xf32>
    %106 = arith.mulf %104, %105 : vector<16x128xf32>
    %c8_i32_27 = arith.constant 8 : i32
    %107 = tpu.dynamic_rotate %106 by %c8_i32_27 dim 1 : vector<16x128xf32>, i32 -> vector<16x128xf32>
    %108 = vector.extract_strided_slice %73 {offsets = [6, 0], sizes = [1, 128], strides = [1, 1]} : vector<9x128xf32> to vector<1x128xf32>
    %109 = vector.broadcast %108 : vector<1x128xf32> to vector<16x128xf32>
    %110 = arith.mulf %107, %109 : vector<16x128xf32>
    %111 = arith.addf %103, %110 : vector<16x128xf32>
    %112 = vector.extract_strided_slice %73 {offsets = [7, 0], sizes = [1, 128], strides = [1, 1]} : vector<9x128xf32> to vector<1x128xf32>
    %113 = vector.broadcast %112 : vector<1x128xf32> to vector<16x128xf32>
    %114 = arith.mulf %106, %113 : vector<16x128xf32>
    %115 = arith.addf %111, %114 : vector<16x128xf32>
    %c120_i32_28 = arith.constant 120 : i32
    %116 = tpu.dynamic_rotate %106 by %c120_i32_28 dim 1 : vector<16x128xf32>, i32 -> vector<16x128xf32>
    %117 = vector.extract_strided_slice %73 {offsets = [8, 0], sizes = [1, 128], strides = [1, 1]} : vector<9x128xf32> to vector<1x128xf32>
    %118 = vector.broadcast %117 : vector<1x128xf32> to vector<16x128xf32>
    %119 = arith.mulf %116, %118 : vector<16x128xf32>
    %120 = arith.addf %115, %119 : vector<16x128xf32>
    %c0_29 = arith.constant 0 : index
    %c0_30 = arith.constant 0 : index
    %121 = vector.load %arg8[%c0_29, %c0_30] : memref<1x128xf32, #tpu.memory_space<vmem>>, vector<1x128xf32>
    %122 = vector.broadcast %121 : vector<1x128xf32> to vector<16x128xf32>
    %123 = arith.addf %120, %122 : vector<16x128xf32>
    %cst_31 = arith.constant 0.000000e+00 : f32
    %cst_32 = arith.constant 6.000000e+00 : f32
    %124 = vector.broadcast %cst_31 : f32 to vector<16x128xf32>
    %125 = arith.maximumf %124, %123 : vector<16x128xf32>
    %126 = vector.broadcast %cst_32 : f32 to vector<16x128xf32>
    %127 = arith.minimumf %126, %125 : vector<16x128xf32>
    %c0_33 = arith.constant 0 : index
    %c0_34 = arith.constant 0 : index
    %128 = vector.load %arg9[%c0_33, %c0_34] : memref<128x16xf32, #tpu.memory_space<vmem>>, vector<128x16xf32>
    %cst_35 = arith.constant dense<0.000000e+00> : vector<16x16xf32>
    %129 = tpu.matmul %127, %128, %cst_35 {dimension_numbers = #tpu.dot_dimension_numbers<[1], [0], [0], [1], [0, 0, 1, 1], [], []>} : vector<16x128xf32>, vector<128x16xf32>, vector<16x16xf32> -> vector<16x16xf32>
    %c0_36 = arith.constant 0 : index
    %c0_37 = arith.constant 0 : index
    %130 = vector.load %arg10[%c0_36, %c0_37] : memref<16x128xf32, #tpu.memory_space<vmem>>, vector<16x128xf32>
    %cst_38 = arith.constant dense<0.000000e+00> : vector<16x128xf32>
    %131 = tpu.matmul %129, %130, %cst_38 {dimension_numbers = #tpu.dot_dimension_numbers<[1], [0], [0], [1], [0, 0, 1, 1], [], []>} : vector<16x16xf32>, vector<16x128xf32>, vector<16x128xf32> -> vector<16x128xf32>
    %c0_39 = arith.constant 0 : index
    %c0_40 = arith.constant 0 : index
    %132 = vector.load %arg11[%c0_39, %c0_40] : memref<1x128xf32, #tpu.memory_space<vmem>>, vector<1x128xf32>
    %133 = vector.broadcast %132 : vector<1x128xf32> to vector<16x128xf32>
    %134 = arith.addf %131, %133 : vector<16x128xf32>
    %c0_41 = arith.constant 0 : index
    %c0_42 = arith.constant 0 : index
    %c0_43 = arith.constant 0 : index
    %135 = vector.load %arg12[%c0_41, %c0_42, %c0_43] : memref<1x16x128xf32, #tpu.memory_space<vmem>>, vector<1x16x128xf32>
    %136 = vector.shape_cast %135 : vector<1x16x128xf32> to vector<16x128xf32>
    %137 = vector.shape_cast %134 : vector<16x128xf32> to vector<1x16x128xf32>
    tpu.vector_store %arg12[%c0_41, %c0_42, %c0_43], %137 {strides = array<i32>} : memref<1x16x128xf32, #tpu.memory_space<vmem>>, vector<1x16x128xf32>,
    return
  }
  func.func @transform_0(%arg0: i32) -> (i32, i32, i32) {
    %c0_i32 = arith.constant 0 : i32
    %c0_i32_0 = arith.constant 0 : i32
    %c0_i32_1 = arith.constant 0 : i32
    return %arg0, %c0_i32, %c0_i32_0 : i32, i32, i32
  }
  func.func @transform_1(%arg0: i32) -> (i32, i32) {
    %c0_i32 = arith.constant 0 : i32
    %c0_i32_0 = arith.constant 0 : i32
    %c0_i32_1 = arith.constant 0 : i32
    return %c0_i32, %c0_i32_0 : i32, i32
  }
  func.func @transform_2(%arg0: i32) -> (i32, i32) {
    %c0_i32 = arith.constant 0 : i32
    %c0_i32_0 = arith.constant 0 : i32
    %c0_i32_1 = arith.constant 0 : i32
    return %c0_i32, %c0_i32_0 : i32, i32
  }
  func.func @transform_3(%arg0: i32) -> (i32, i32) {
    %c0_i32 = arith.constant 0 : i32
    %c0_i32_0 = arith.constant 0 : i32
    %c0_i32_1 = arith.constant 0 : i32
    return %c0_i32, %c0_i32_0 : i32, i32
  }
  func.func @transform_4(%arg0: i32) -> (i32, i32) {
    %c0_i32 = arith.constant 0 : i32
    %c0_i32_0 = arith.constant 0 : i32
    %c0_i32_1 = arith.constant 0 : i32
    return %c0_i32, %c0_i32_0 : i32, i32
  }
  func.func @transform_5(%arg0: i32) -> (i32, i32) {
    %c0_i32 = arith.constant 0 : i32
    %c0_i32_0 = arith.constant 0 : i32
    %c0_i32_1 = arith.constant 0 : i32
    return %c0_i32, %c0_i32_0 : i32, i32
  }
  func.func @transform_6(%arg0: i32) -> (i32, i32) {
    %c0_i32 = arith.constant 0 : i32
    %c0_i32_0 = arith.constant 0 : i32
    %c0_i32_1 = arith.constant 0 : i32
    return %c0_i32, %c0_i32_0 : i32, i32
  }
  func.func @transform_7(%arg0: i32) -> (i32, i32) {
    %c0_i32 = arith.constant 0 : i32
    %c0_i32_0 = arith.constant 0 : i32
    %c0_i32_1 = arith.constant 0 : i32
    return %c0_i32, %c0_i32_0 : i32, i32
  }
  func.func @transform_8(%arg0: i32) -> (i32, i32) {
    %c0_i32 = arith.constant 0 : i32
    %c0_i32_0 = arith.constant 0 : i32
    %c0_i32_1 = arith.constant 0 : i32
    return %c0_i32, %c0_i32_0 : i32, i32
  }
  func.func @transform_9(%arg0: i32) -> (i32, i32) {
    %c0_i32 = arith.constant 0 : i32
    %c0_i32_0 = arith.constant 0 : i32
    %c0_i32_1 = arith.constant 0 : i32
    return %c0_i32, %c0_i32_0 : i32, i32
  }
  func.func @transform_10(%arg0: i32) -> (i32, i32) {
    %c0_i32 = arith.constant 0 : i32
    %c0_i32_0 = arith.constant 0 : i32
    %c0_i32_1 = arith.constant 0 : i32
    return %c0_i32, %c0_i32_0 : i32, i32
  }
  func.func @transform_11(%arg0: i32) -> (i32, i32, i32) {
    %c0_i32 = arith.constant 0 : i32
    %c0_i32_0 = arith.constant 0 : i32
    %c0_i32_1 = arith.constant 0 : i32
    return %arg0, %c0_i32, %c0_i32_0 : i32, i32, i32
  }
}

</mosaic_0001>

<llo_original>
// kernel: tpu_custom_call.1
$region0: #{tpu_custom_call.1}
  #allocation0 [shape = 'u32[]', space=smem, size = 0x4, offset = 0x4, fixed_abs, tag = 'smem constant byte address 0x4 - core index']
  #allocation1 [shape = 'u32[72,128]{1,0:T(1,128)}', space=vmem, size = 0x9000, scoped, tag = 'internal scratch']
  %s0 = inlined_call_operand.vmem [shape: f32[2,16,64], index: 0, kind: input, shape index: {}]
  %s1 = inlined_call_operand.vmem [shape: f32[9,64], index: 1, kind: input, shape index: {}]
  %s2 = inlined_call_operand.vmem [shape: f32[1,64], index: 2, kind: input, shape index: {}]
  %s3 = inlined_call_operand.vmem [shape: f32[64,16], index: 3, kind: input, shape index: {}]
  %s4 = inlined_call_operand.vmem [shape: f32[16,128], index: 4, kind: input, shape index: {}]
  %s5 = inlined_call_operand.vmem [shape: f32[1,128], index: 5, kind: input, shape index: {}]
  %s6 = inlined_call_operand.vmem [shape: f32[9,128], index: 6, kind: input, shape index: {}]
  %s7 = inlined_call_operand.vmem [shape: f32[1,128], index: 7, kind: input, shape index: {}]
  %s8 = inlined_call_operand.vmem [shape: f32[128,16], index: 8, kind: input, shape index: {}]
  %s9 = inlined_call_operand.vmem [shape: f32[16,128], index: 9, kind: input, shape index: {}]
  %s10 = inlined_call_operand.vmem [shape: f32[1,128], index: 10, kind: input, shape index: {}]
  %s11 = inlined_call_operand.hbm [shape: f32[2,16,128], index: 11, kind: output, shape index: {}]
  %s12 = sld [smem:[#allocation0]]
  $region77: #{tpu_custom_call.1} parent=0
    _
  %s14 = ssub.s32 1, %s12
  %s15 = scalar_select 0, %s14, %s12
  $region1: #{tpu_custom_call.1} parent=0
    #allocation2 [shape = 'u8[16384]{0}', space=vmem, size = 0x4000, scoped, tag = 'output window, operand 0']
    #allocation3 [shape = 's32[2]{0}', space=sflag, size = 0x8, scoped, tag = 'scoped memory for tpu_custom_call.1']
    %16 = vsyncpa [#allocation3], 0
    %s17 = scalar_lea.sflag [#allocation3], 1
    %18 = vsyncpa %s17, 0
    loop: start=0, step=1, limit=4
    $region2: #{tpu_custom_call.1} parent=1 // loop_pre_header
      _
    $region3: #{tpu_custom_call.1} parent=1 // loop_header
      %s20 = sphi 0, %s24
      %p21 = scmp.ge.s32.totalorder %s20, 4
      %s30 = sphi 0, %s32
      %s33 = sphi 0, %s30
      %s34 = sphi 0, %s33
      %s50 = sphi 0, %s34
      %s54 = sphi 0, %s54
      %s56 = sphi 0, %s54
      %s57 = sphi 0, %s56
      %s71 = sphi 0, %s57
      %s75 = sphi 0, %s75
      %s77 = sphi 0, %s75
      %s78 = sphi 0, %s77
      %s92 = sphi 0, %s78
      %s96 = sphi 0, %s96
      %s98 = sphi 0, %s96
      %s99 = sphi 0, %s98
      %s113 = sphi 0, %s99
      %s117 = sphi 0, %s117
      %s119 = sphi 0, %s117
      %s120 = sphi 0, %s119
      %s134 = sphi 0, %s120
      %s138 = sphi 0, %s138
      %s140 = sphi 0, %s138
      %s141 = sphi 0, %s140
      %s155 = sphi 0, %s141
      %s159 = sphi 0, %s159
      %s161 = sphi 0, %s159
      %s162 = sphi 0, %s161
      %s176 = sphi 0, %s162
      %s180 = sphi 0, %s180
      %s182 = sphi 0, %s180
      %s183 = sphi 0, %s182
      %s197 = sphi 0, %s183
      %s201 = sphi 0, %s201
      %s203 = sphi 0, %s201
      %s204 = sphi 0, %s203
      %s218 = sphi 0, %s204
      %s222 = sphi 0, %s222
      %s224 = sphi 0, %s222
      %s225 = sphi 0, %s224
      %s239 = sphi 0, %s225
      %s243 = sphi 0, %s243
      %s245 = sphi 0, %s243
      %s246 = sphi 0, %s245
      %s260 = sphi 0, %s246
      %s266 = sphi 0, %s268
      %s269 = sphi 0, %s266
      %s270 = sphi 0, %s269
      %s286 = sphi 0, %s270
    $region4: #{tpu_custom_call.1} parent=1 // loop_header_branch
      %23 = sbr.rel (%p21) target = $region8
    $region5: #{tpu_custom_call.1} parent=1 // loop_body
      %s25 = ssub.s32 %s20, 1
      %s26 = ssub.s32 %s20, 2
      %s27 = sadd.s32 %s20, 1
      %s28 = ssub.s32 %s20, %s27
      %p29 = scmp.eq.s32.totalorder %s28, 0
      %s31 = sadd.s32 %s30, 1
      %s32 = scalar_select %p29, %s30, %s31
      %p35 = pneg %p29
      %p36 = scmp.eq.s32.totalorder %s20, 1
      %p37 = por %p35, %p36
      %p38 = scmp.ne.s32.totalorder %s30, %s33
      %p39 = scmp.eq.s32.totalorder %s20, 0
      %p40 = por %p38, %p39
      %p41 = scmp.ne.s32.totalorder %s30, %s33
      %p42 = scmp.eq.s32.totalorder %s25, 1
      %p43 = por %p41, %p42
      %p44 = scmp.ne.s32.totalorder %s33, %s34
      %p45 = scmp.eq.s32.totalorder %s25, 0
      %p46 = por %p44, %p45
      %p47 = scmp.ne.s32.totalorder %s33, %s34
      %p48 = scmp.eq.s32.totalorder %s26, 1
      %p49 = por %p47, %p48
      %p51 = scmp.ne.s32.totalorder %s34, %s50
      %p52 = scmp.eq.s32.totalorder %s26, 0
      %p53 = por %p51, %p52
      %s55 = sadd.s32 %s54, 1
      %p58 = scmp.eq.s32.totalorder %s20, 1
      %p59 = scmp.ne.s32.totalorder %s54, %s56
      %p60 = scmp.eq.s32.totalorder %s20, 0
      %p61 = por %p59, %p60
      %p62 = scmp.ne.s32.totalorder %s54, %s56
      %p63 = scmp.eq.s32.totalorder %s25, 1
      %p64 = por %p62, %p63
      %p65 = scmp.ne.s32.totalorder %s56, %s57
      %p66 = scmp.eq.s32.totalorder %s25, 0
      %p67 = por %p65, %p66
      %p68 = scmp.ne.s32.totalorder %s56, %s57
      %p69 = scmp.eq.s32.totalorder %s26, 1
      %p70 = por %p68, %p69
      %p72 = scmp.ne.s32.totalorder %s57, %s71
      %p73 = scmp.eq.s32.totalorder %s26, 0
      %p74 = por %p72, %p73
      %s76 = sadd.s32 %s75, 1
      %p79 = scmp.eq.s32.totalorder %s20, 1
      %p80 = scmp.ne.s32.totalorder %s75, %s77
      %p81 = scmp.eq.s32.totalorder %s20, 0
      %p82 = por %p80, %p81
      %p83 = scmp.ne.s32.totalorder %s75, %s77
      %p84 = scmp.eq.s32.totalorder %s25, 1
      %p85 = por %p83, %p84
      %p86 = scmp.ne.s32.totalorder %s77, %s78
      %p87 = scmp.eq.s32.totalorder %s25, 0
      %p88 = por %p86, %p87
      %p89 = scmp.ne.s32.totalorder %s77, %s78
      %p90 = scmp.eq.s32.totalorder %s26, 1
      %p91 = por %p89, %p90
      %p93 = scmp.ne.s32.totalorder %s78, %s92
      %p94 = scmp.eq.s32.totalorder %s26, 0
      %p95 = por %p93, %p94
      %s97 = sadd.s32 %s96, 1
      %p100 = scmp.eq.s32.totalorder %s20, 1
      %p101 = scmp.ne.s32.totalorder %s96, %s98
      %p102 = scmp.eq.s32.totalorder %s20, 0
      %p103 = por %p101, %p102
      %p104 = scmp.ne.s32.totalorder %s96, %s98
      %p105 = scmp.eq.s32.totalorder %s25, 1
      %p106 = por %p104, %p105
      %p107 = scmp.ne.s32.totalorder %s98, %s99
      %p108 = scmp.eq.s32.totalorder %s25, 0
      %p109 = por %p107, %p108
      %p110 = scmp.ne.s32.totalorder %s98, %s99
      %p111 = scmp.eq.s32.totalorder %s26, 1
      %p112 = por %p110, %p111
      %p114 = scmp.ne.s32.totalorder %s99, %s113
      %p115 = scmp.eq.s32.totalorder %s26, 0
      %p116 = por %p114, %p115
      %s118 = sadd.s32 %s117, 1
      %p121 = scmp.eq.s32.totalorder %s20, 1
      %p122 = scmp.ne.s32.totalorder %s117, %s119
      %p123 = scmp.eq.s32.totalorder %s20, 0
      %p124 = por %p122, %p123
      %p125 = scmp.ne.s32.totalorder %s117, %s119
      %p126 = scmp.eq.s32.totalorder %s25, 1
      %p127 = por %p125, %p126
      %p128 = scmp.ne.s32.totalorder %s119, %s120
      %p129 = scmp.eq.s32.totalorder %s25, 0
      %p130 = por %p128, %p129
      %p131 = scmp.ne.s32.totalorder %s119, %s120
      %p132 = scmp.eq.s32.totalorder %s26, 1
      %p133 = por %p131, %p132
      %p135 = scmp.ne.s32.totalorder %s120, %s134
      %p136 = scmp.eq.s32.totalorder %s26, 0
      %p137 = por %p135, %p136
      %s139 = sadd.s32 %s138, 1
      %p142 = scmp.eq.s32.totalorder %s20, 1
      %p143 = scmp.ne.s32.totalorder %s138, %s140
      %p144 = scmp.eq.s32.totalorder %s20, 0
      %p145 = por %p143, %p144
      %p146 = scmp.ne.s32.totalorder %s138, %s140
      %p147 = scmp.eq.s32.totalorder %s25, 1
      %p148 = por %p146, %p147
      %p149 = scmp.ne.s32.totalorder %s140, %s141
      %p150 = scmp.eq.s32.totalorder %s25, 0
      %p151 = por %p149, %p150
      %p152 = scmp.ne.s32.totalorder %s140, %s141
      %p153 = scmp.eq.s32.totalorder %s26, 1
      %p154 = por %p152, %p153
      %p156 = scmp.ne.s32.totalorder %s141, %s155
      %p157 = scmp.eq.s32.totalorder %s26, 0
      %p158 = por %p156, %p157
      %s160 = sadd.s32 %s159, 1
      %p163 = scmp.eq.s32.totalorder %s20, 1
      %p164 = scmp.ne.s32.totalorder %s159, %s161
      %p165 = scmp.eq.s32.totalorder %s20, 0
      %p166 = por %p164, %p165
      %p167 = scmp.ne.s32.totalorder %s159, %s161
      %p168 = scmp.eq.s32.totalorder %s25, 1
      %p169 = por %p167, %p168
      %p170 = scmp.ne.s32.totalorder %s161, %s162
      %p171 = scmp.eq.s32.totalorder %s25, 0
      %p172 = por %p170, %p171
      %p173 = scmp.ne.s32.totalorder %s161, %s162
      %p174 = scmp.eq.s32.totalorder %s26, 1
      %p175 = por %p173, %p174
      %p177 = scmp.ne.s32.totalorder %s162, %s176
      %p178 = scmp.eq.s32.totalorder %s26, 0
      %p179 = por %p177, %p178
      %s181 = sadd.s32 %s180, 1
      %p184 = scmp.eq.s32.totalorder %s20, 1
      %p185 = scmp.ne.s32.totalorder %s180, %s182
      %p186 = scmp.eq.s32.totalorder %s20, 0
      %p187 = por %p185, %p186
      %p188 = scmp.ne.s32.totalorder %s180, %s182
      %p189 = scmp.eq.s32.totalorder %s25, 1
      %p190 = por %p188, %p189
      %p191 = scmp.ne.s32.totalorder %s182, %s183
      %p192 = scmp.eq.s32.totalorder %s25, 0
      %p193 = por %p191, %p192
      %p194 = scmp.ne.s32.totalorder %s182, %s183
      %p195 = scmp.eq.s32.totalorder %s26, 1
      %p196 = por %p194, %p195
      %p198 = scmp.ne.s32.totalorder %s183, %s197
      %p199 = scmp.eq.s32.totalorder %s26, 0
      %p200 = por %p198, %p199
      %s202 = sadd.s32 %s201, 1
      %p205 = scmp.eq.s32.totalorder %s20, 1
      %p206 = scmp.ne.s32.totalorder %s201, %s203
      %p207 = scmp.eq.s32.totalorder %s20, 0
      %p208 = por %p206, %p207
      %p209 = scmp.ne.s32.totalorder %s201, %s203
      %p210 = scmp.eq.s32.totalorder %s25, 1
      %p211 = por %p209, %p210
      %p212 = scmp.ne.s32.totalorder %s203, %s204
      %p213 = scmp.eq.s32.totalorder %s25, 0
      %p214 = por %p212, %p213
      %p215 = scmp.ne.s32.totalorder %s203, %s204
      %p216 = scmp.eq.s32.totalorder %s26, 1
      %p217 = por %p215, %p216
      %p219 = scmp.ne.s32.totalorder %s204, %s218
      %p220 = scmp.eq.s32.totalorder %s26, 0
      %p221 = por %p219, %p220
      %s223 = sadd.s32 %s222, 1
      %p226 = scmp.eq.s32.totalorder %s20, 1
      %p227 = scmp.ne.s32.totalorder %s222, %s224
      %p228 = scmp.eq.s32.totalorder %s20, 0
      %p229 = por %p227, %p228
      %p230 = scmp.ne.s32.totalorder %s222, %s224
      %p231 = scmp.eq.s32.totalorder %s25, 1
      %p232 = por %p230, %p231
      %p233 = scmp.ne.s32.totalorder %s224, %s225
      %p234 = scmp.eq.s32.totalorder %s25, 0
      %p235 = por %p233, %p234
      %p236 = scmp.ne.s32.totalorder %s224, %s225
      %p237 = scmp.eq.s32.totalorder %s26, 1
      %p238 = por %p236, %p237
      %p240 = scmp.ne.s32.totalorder %s225, %s239
      %p241 = scmp.eq.s32.totalorder %s26, 0
      %p242 = por %p240, %p241
      %s244 = sadd.s32 %s243, 1
      %p247 = scmp.eq.s32.totalorder %s20, 1
      %p248 = scmp.ne.s32.totalorder %s243, %s245
      %p249 = scmp.eq.s32.totalorder %s20, 0
      %p250 = por %p248, %p249
      %p251 = scmp.ne.s32.totalorder %s243, %s245
      %p252 = scmp.eq.s32.totalorder %s25, 1
      %p253 = por %p251, %p252
      %p254 = scmp.ne.s32.totalorder %s245, %s246
      %p255 = scmp.eq.s32.totalorder %s25, 0
      %p256 = por %p254, %p255
      %p257 = scmp.ne.s32.totalorder %s245, %s246
      %p258 = scmp.eq.s32.totalorder %s26, 1
      %p259 = por %p257, %p258
      %p261 = scmp.ne.s32.totalorder %s246, %s260
      %p262 = scmp.eq.s32.totalorder %s26, 0
      %p263 = por %p261, %p262
      %s264 = ssub.s32 %s20, %s27
      %p265 = scmp.eq.s32.totalorder %s264, 0
      %s267 = sadd.s32 %s266, 1
      %s268 = scalar_select %p265, %s266, %s267
      %p271 = pneg %p265
      %p272 = scmp.eq.s32.totalorder %s20, 1
      %p273 = por %p271, %p272
      %p274 = scmp.ne.s32.totalorder %s266, %s269
      %p275 = scmp.eq.s32.totalorder %s20, 0
      %p276 = por %p274, %p275
      %p277 = scmp.ne.s32.totalorder %s266, %s269
      %p278 = scmp.eq.s32.totalorder %s25, 1
      %p279 = por %p277, %p278
      %p280 = scmp.ne.s32.totalorder %s269, %s270
      %p281 = scmp.eq.s32.totalorder %s25, 0
      %p282 = por %p280, %p281
      %p283 = scmp.ne.s32.totalorder %s269, %s270
      %p284 = scmp.eq.s32.totalorder %s26, 1
      %p285 = por %p283, %p284
      %p287 = scmp.ne.s32.totalorder %s270, %s286
      %p288 = scmp.eq.s32.totalorder %s26, 0
      %p289 = por %p287, %p288
      %p290 = scmp.le.s32.totalorder 1, %s20
      %p291 = scmp.lt.s32.totalorder %s20, 3
      %p292 = pnand %p290, %p291
      %p293 = pneg %p292
      // Predicated region
      $region9: #{tpu_custom_call.1} parent=5 // pred_check
        _
      $region10: #{tpu_custom_call.1} parent=5 // pred_check_branch
        %295 = sbr.rel (%p292) target = $region12
      $region11: #{tpu_custom_call.1} parent=5 // pred_region
        %s296 = ssub.s32 %s20, 1
        // Predicated region
        $region13: #{tpu_custom_call.1} parent=11 // pred_check
          %p297 = pneg %p67
        $region14: #{tpu_custom_call.1} parent=11 // pred_check_branch
          %299 = sbr.rel (%p297) target = $region16
        $region15: #{tpu_custom_call.1} parent=11 // pred_region
          _
        $region16: #{tpu_custom_call.1} parent=11 // pred_fallthru
          _
        // Predicated region
        $region17: #{tpu_custom_call.1} parent=11 // pred_check
          %p300 = pneg %p88
        $region18: #{tpu_custom_call.1} parent=11 // pred_check_branch
          %302 = sbr.rel (%p300) target = $region20
        $region19: #{tpu_custom_call.1} parent=11 // pred_region
          _
        $region20: #{tpu_custom_call.1} parent=11 // pred_fallthru
          _
        // Predicated region
        $region21: #{tpu_custom_call.1} parent=11 // pred_check
          %p303 = pneg %p109
        $region22: #{tpu_custom_call.1} parent=11 // pred_check_branch
          %305 = sbr.rel (%p303) target = $region24
        $region23: #{tpu_custom_call.1} parent=11 // pred_region
          _
        $region24: #{tpu_custom_call.1} parent=11 // pred_fallthru
          _
        // Predicated region
        $region25: #{tpu_custom_call.1} parent=11 // pred_check
          %p306 = pneg %p130
        $region26: #{tpu_custom_call.1} parent=11 // pred_check_branch
          %308 = sbr.rel (%p306) target = $region28
        $region27: #{tpu_custom_call.1} parent=11 // pred_region
          _
        $region28: #{tpu_custom_call.1} parent=11 // pred_fallthru
          _
        // Predicated region
        $region29: #{tpu_custom_call.1} parent=11 // pred_check
          %p309 = pneg %p151
        $region30: #{tpu_custom_call.1} parent=11 // pred_check_branch
          %311 = sbr.rel (%p309) target = $region32
        $region31: #{tpu_custom_call.1} parent=11 // pred_region
          _
        $region32: #{tpu_custom_call.1} parent=11 // pred_fallthru
          _
        // Predicated region
        $region33: #{tpu_custom_call.1} parent=11 // pred_check
          %p312 = pneg %p172
        $region34: #{tpu_custom_call.1} parent=11 // pred_check_branch
          %314 = sbr.rel (%p312) target = $region36
        $region35: #{tpu_custom_call.1} parent=11 // pred_region
          _
        $region36: #{tpu_custom_call.1} parent=11 // pred_fallthru
          _
        // Predicated region
        $region37: #{tpu_custom_call.1} parent=11 // pred_check
          %p315 = pneg %p193
        $region38: #{tpu_custom_call.1} parent=11 // pred_check_branch
          %317 = sbr.rel (%p315) target = $region40
        $region39: #{tpu_custom_call.1} parent=11 // pred_region
          _
        $region40: #{tpu_custom_call.1} parent=11 // pred_fallthru
          _
        // Predicated region
        $region41: #{tpu_custom_call.1} parent=11 // pred_check
          %p318 = pneg %p214
        $region42: #{tpu_custom_call.1} parent=11 // pred_check_branch
          %320 = sbr.rel (%p318) target = $region44
        $region43: #{tpu_custom_call.1} parent=11 // pred_region
          _
        $region44: #{tpu_custom_call.1} parent=11 // pred_fallthru
          _
        // Predicated region
        $region45: #{tpu_custom_call.1} parent=11 // pred_check
          %p321 = pneg %p235
        $region46: #{tpu_custom_call.1} parent=11 // pred_check_branch
          %323 = sbr.rel (%p321) target = $region48
        $region47: #{tpu_custom_call.1} parent=11 // pred_region
          _
        $region48: #{tpu_custom_call.1} parent=11 // pred_fallthru
          _
        // Predicated region
        $region49: #{tpu_custom_call.1} parent=11 // pred_check
          %p324 = pneg %p256
        $region50: #{tpu_custom_call.1} parent=11 // pred_check_branch
          %326 = sbr.rel (%p324) target = $region52
        $region51: #{tpu_custom_call.1} parent=11 // pred_region
          _
        $region52: #{tpu_custom_call.1} parent=11 // pred_fallthru
          _
      $region12: #{tpu_custom_call.1} parent=5 // pred_fallthru
        _
      %p327 = scmp.lt.s32.totalorder %s20, 2
      // Predicated region
      $region53: #{tpu_custom_call.1} parent=5 // pred_check
        %p328 = pneg %p327
      $region54: #{tpu_custom_call.1} parent=5 // pred_check_branch
        %330 = sbr.rel (%p328) target = $region56
      $region55: #{tpu_custom_call.1} parent=5 // pred_region
        // Predicated region
        $region57: #{tpu_custom_call.1} parent=55 // pred_check
          %p331 = pneg %p40
        $region58: #{tpu_custom_call.1} parent=55 // pred_check_branch
          %333 = sbr.rel (%p331) target = $region60
        $region59: #{tpu_custom_call.1} parent=55 // pred_region
          %p334 = scmp.lt.s32.totalorder %s20, 1
          %s335 = scalar_select %p334, %s20, 1
          %s336 = smul.addr %s335, 2
          %s337 = smul.addr %s336, 8
          %s338 = scalar_lea.vmem %s0, %s337
        $region60: #{tpu_custom_call.1} parent=55 // pred_fallthru
          _
      $region56: #{tpu_custom_call.1} parent=5 // pred_fallthru
        _
      %p339 = scmp.le.s32.totalorder 1, %s20
      %p340 = scmp.lt.s32.totalorder %s20, 3
      %p341 = pnand %p339, %p340
      %p342 = pneg %p341
      // Predicated region
      $region61: #{tpu_custom_call.1} parent=5 // pred_check
        _
      $region62: #{tpu_custom_call.1} parent=5 // pred_check_branch
        %344 = sbr.rel (%p341) target = $region64
      $region63: #{tpu_custom_call.1} parent=5 // pred_region
        %s345 = ssub.s32 %s20, 1
        %p346 = scmp.lt.s32.totalorder %s25, 1
        %s347 = scalar_select %p346, %s25, 1
        %s348 = smul.addr %s347, 2
        %s349 = smul.addr %s348, 8
        %s350 = scalar_lea.vmem %s0, %s349
        %p351 = pneg %p46
        %p352 = pneg %p43
        %p353 = pneg %p67
        %p354 = pneg %p64
        %p355 = pneg %p88
        %p356 = pneg %p85
        %p357 = pneg %p109
        %p358 = pneg %p106
        %p359 = pneg %p130
        %p360 = pneg %p127
        %p361 = pneg %p151
        %p362 = pneg %p148
        %p363 = pneg %p172
        %p364 = pneg %p169
        %p365 = pneg %p193
        %p366 = pneg %p190
        %p367 = pneg %p214
        %p368 = pneg %p211
        %p369 = pneg %p235
        %p370 = pneg %p232
        %p371 = pneg %p256
        %p372 = pneg %p253
        %p373 = pneg %p282
        %p374 = pneg %p279
        %s375 = sand.u32 %s269, 1
        %s376 = scalar_lea.sflag [#allocation3], %s375
        %s377 = sand.u32 %s269, 1
        %s378 = smul.addr %s377, 16
        %s379 = scalar_lea.vmem [#allocation2], %s378
        %p380 = scmp.lt.s32.totalorder %s25, 1
        %s381 = scalar_select %p380, %s25, 1
        %s382 = smul.addr %s381, 2
        %s383 = smul.addr %s382, 8
        %s384 = scalar_lea.vmem %s0, %s383
        %v385 = vld [vmem:[%s384] sm:$0xff]
        %v386 = vld [vmem:[%s384 + $0x8] sm:$0xff]
        %v387 = vlaneseq
        %v388 = vshrl.u32 %v387, 7
        %v389 = vadd.s32 %v388, 8
        %vm390 = vcmp.ge.s32.totalorder %v388, 1
        %vm391 = vcmp.ge.s32.totalorder %v389, 1
        %v392 = vsel %vm390, 1, 0
        %v393 = vsel %vm391, 1, 0
        %v394 = vcvt.s32.f32 %v392
        %v395 = vcvt.s32.f32 %v393
        %vm396 = vcmp.lt.s32.totalorder %v388, 15
        %vm397 = vcmp.lt.s32.totalorder %v389, 15
        %v398 = vsel %vm396, 1, 0
        %v399 = vsel %vm397, 1, 0
        %v400 = vcvt.s32.f32 %v398
        %v401 = vcvt.s32.f32 %v399
        %v402 = vld [vmem:[%s1] sm:$0xff]
        %v403 = vld [vmem:[%s1 + $0x8] sm:$0x1]
        %v404 = vperm.slane %v402, 4
        %v405 = vmul.f32 %v385, %v404
        %v406 = vmul.f32 %v386, %v404
        %v407 = vrot.slane %v385, 7
        %v408 = vrot.slane %v386, 7
        %vm409 = vcmp.lt.s32.totalorder %v388, 1
        %v410 = vsel %vm409, %v407, %v408
        %v411 = vsel %vm409, %v408, %v407
        %v412 = vmul.f32 %v411, %v394
        %v413 = vmul.f32 %v410, %v395
        %vm414 = vcmask 1048064
        %415 = vrot.lane.b32.xlu0 %v412, 64
        %v416 = vpop.permute.xlu0 %415
        %v417 = vsel %vm414, %v416, %v412
        %418 = vrot.lane.b32.xlu0 %v413, 64
        %v419 = vpop.permute.xlu0 %418
        %v420 = vsel %vm414, %v419, %v413
        %421 = vrot.lane.b32.xlu0 %v417, 64
        %v422 = vpop.permute.xlu0 %421
        %423 = vrot.lane.b32.xlu0 %v420, 64
        %v424 = vpop.permute.xlu0 %423
        %v425 = vsel %vm414, %v422, %v412
        %v426 = vsel %vm414, %v424, %v413
        %v427 = vperm.slane %v402, 0
        %429 = vrot.lane.b32.xlu0 %v427, 60
        %v430 = vpop.permute.xlu0 %429
        %v432 = vmul.f32 %v425, %v430
        %v433 = vmul.f32 %v426, %v430
        %436 = vrot.lane.b32.xlu0 %v432, 68
        %v437 = vpop.permute.xlu0 %436
        %438 = vrot.lane.b32.xlu0 %v433, 68
        %v439 = vpop.permute.xlu0 %438
        %v442 = vadd.f32 %v405, %v437
        %v443 = vadd.f32 %v406, %v439
        %v444 = vperm.slane %v402, 1
        %v445 = vmul.f32 %v412, %v444
        %v446 = vmul.f32 %v413, %v444
        %v447 = vadd.f32 %v442, %v445
        %v448 = vadd.f32 %v443, %v446
        %v449 = vperm.slane %v402, 2
        %451 = vrot.lane.b32.xlu0 %v449, 4
        %v452 = vpop.permute.xlu0 %451
        %v454 = vmul.f32 %v425, %v452
        %v455 = vmul.f32 %v426, %v452
        %458 = vrot.lane.b32.xlu0 %v454, 124
        %v459 = vpop.permute.xlu0 %458
        %460 = vrot.lane.b32.xlu0 %v455, 124
        %v461 = vpop.permute.xlu0 %460
        %v464 = vadd.f32 %v447, %v459
        %v465 = vadd.f32 %v448, %v461
        %466 = vrot.lane.b32.xlu0 %v385, 64
        %v467 = vpop.permute.xlu0 %466
        %v468 = vsel %vm414, %v467, %v385
        %469 = vrot.lane.b32.xlu0 %v386, 64
        %v470 = vpop.permute.xlu0 %469
        %v471 = vsel %vm414, %v470, %v386
        %472 = vrot.lane.b32.xlu0 %v468, 64
        %v473 = vpop.permute.xlu0 %472
        %474 = vrot.lane.b32.xlu0 %v471, 64
        %v475 = vpop.permute.xlu0 %474
        %v476 = vsel %vm414, %v473, %v385
        %v477 = vsel %vm414, %v475, %v386
        %v478 = vperm.slane %v402, 3
        %480 = vrot.lane.b32.xlu0 %v478, 60
        %v481 = vpop.permute.xlu0 %480
        %v483 = vmul.f32 %v476, %v481
        %v484 = vmul.f32 %v477, %v481
        %487 = vrot.lane.b32.xlu0 %v483, 68
        %v488 = vpop.permute.xlu0 %487
        %489 = vrot.lane.b32.xlu0 %v484, 68
        %v490 = vpop.permute.xlu0 %489
        %v493 = vadd.f32 %v464, %v488
        %v494 = vadd.f32 %v465, %v490
        %v495 = vperm.slane %v402, 5
        %497 = vrot.lane.b32.xlu0 %v495, 4
        %v498 = vpop.permute.xlu0 %497
        %v500 = vmul.f32 %v476, %v498
        %v501 = vmul.f32 %v477, %v498
        %504 = vrot.lane.b32.xlu0 %v500, 124
        %v505 = vpop.permute.xlu0 %504
        %506 = vrot.lane.b32.xlu0 %v501, 124
        %v507 = vpop.permute.xlu0 %506
        %v510 = vadd.f32 %v493, %v505
        %v511 = vadd.f32 %v494, %v507
        %v512 = vrot.slane %v385, 1
        %v513 = vrot.slane %v386, 1
        %vm514 = vcmp.lt.s32.totalorder %v388, 7
        %v515 = vsel %vm514, %v512, %v513
        %v516 = vsel %vm514, %v513, %v512
        %v517 = vmul.f32 %v515, %v400
        %v518 = vmul.f32 %v516, %v401
        %519 = vrot.lane.b32.xlu0 %v517, 64
        %v520 = vpop.permute.xlu0 %519
        %v521 = vsel %vm414, %v520, %v517
        %522 = vrot.lane.b32.xlu0 %v518, 64
        %v523 = vpop.permute.xlu0 %522
        %v524 = vsel %vm414, %v523, %v518
        %525 = vrot.lane.b32.xlu0 %v521, 64
        %v526 = vpop.permute.xlu0 %525
        %527 = vrot.lane.b32.xlu0 %v524, 64
        %v528 = vpop.permute.xlu0 %527
        %v529 = vsel %vm414, %v526, %v517
        %v530 = vsel %vm414, %v528, %v518
        %v531 = vperm.slane %v402, 6
        %533 = vrot.lane.b32.xlu0 %v531, 60
        %v534 = vpop.permute.xlu0 %533
        %v536 = vmul.f32 %v529, %v534
        %v537 = vmul.f32 %v530, %v534
        %540 = vrot.lane.b32.xlu0 %v536, 68
        %v541 = vpop.permute.xlu0 %540
        %542 = vrot.lane.b32.xlu0 %v537, 68
        %v543 = vpop.permute.xlu0 %542
        %v546 = vadd.f32 %v510, %v541
        %v547 = vadd.f32 %v511, %v543
        %v548 = vperm.slane %v402, 7
        %v549 = vmul.f32 %v517, %v548
        %v550 = vmul.f32 %v518, %v548
        %v551 = vadd.f32 %v546, %v549
        %v552 = vadd.f32 %v547, %v550
        %v553 = vperm.slane %v403, 0
        %555 = vrot.lane.b32.xlu0 %v553, 4
        %v556 = vpop.permute.xlu0 %555
        %v558 = vmul.f32 %v529, %v556
        %v559 = vmul.f32 %v530, %v556
        %562 = vrot.lane.b32.xlu0 %v558, 124
        %v563 = vpop.permute.xlu0 %562
        %564 = vrot.lane.b32.xlu0 %v559, 124
        %v565 = vpop.permute.xlu0 %564
        %v568 = vadd.f32 %v551, %v563
        %v569 = vadd.f32 %v552, %v565
        %v570 = vld [vmem:[%s2] sm:$0x1]
        %v572 = vperm.slane %v570, 0
        %v574 = vadd.f32 %v568, %v572
        %v575 = vadd.f32 %v569, %v572
        %v576 = vld [vmem:[%s3] sm:$0xff]
        %v577 = vld [vmem:[%s3 + $0x8] sm:$0xff]
        %v578 = vld [vmem:[%s3 + $0x10] sm:$0xff]
        %v579 = vld [vmem:[%s3 + $0x18] sm:$0xff]
        %v580 = vld [vmem:[%s3 + $0x20] sm:$0xff]
        %v581 = vld [vmem:[%s3 + $0x28] sm:$0xff]
        %v582 = vld [vmem:[%s3 + $0x30] sm:$0xff]
        %v583 = vld [vmem:[%s3 + $0x38] sm:$0xff]
        %vm584 = vcmask 523264
        %v586 = vsel %vm584, %v574, 0
        %v589 = vsel %vm584, %v575, 0
        %591 = vmatpush.msra.mxu0 0.0
        %592 = vmatpush.msra.mxu0 0.0
        %593 = vmatpush.msra.mxu0 0.0
        %594 = vmatpush.msra.mxu0 0.0
        %595 = vmatpush.msra.mxu0 0.0
        %596 = vmatpush.msra.mxu0 0.0
        %597 = vmatpush.msra.mxu0 0.0
        %598 = vmatpush.msra.mxu0 0.0
        %599 = vmatpush.msra.mxu0 %v583
        %600 = vmatpush.msra.mxu0 %v582
        %601 = vmatpush.msra.mxu0 %v581
        %602 = vmatpush.msra.mxu0 %v580
        %603 = vmatpush.msra.mxu0 %v579
        %604 = vmatpush.msra.mxu0 %v578
        %605 = vmatpush.msra.mxu0 %v577
        %606 = vmatpush.msra.mxu0 %v576
        %607 = vmatmul.f32.gmra.mxu0 %v586
        %v608 = vpop.f32.mrf.mxu0
        %v609 = vadd.f32 0.0, %v608
        %610 = vmatmul.f32.gmra.mxu0 %v589
        %v611 = vpop.f32.mrf.mxu0
        %v612 = vadd.f32 0.0, %v611
        %613 = vdwg.mxu0
        %v614 = vld [vmem:[%s4] sm:$0xff]
        %v615 = vld [vmem:[%s4 + $0x8] sm:$0xff]
        %v616 = vld [vmem:[%s5] sm:$0x1]
        %v618 = vperm.slane %v616, 0
        %vm620 = vcmask 130048
        %v622 = vsel %vm620, %v609, 0
        %v625 = vsel %vm620, %v612, 0
        %627 = vmatpush.msra.mxu0 0.0
        %628 = vmatpush.msra.mxu0 0.0
        %629 = vmatpush.msra.mxu0 0.0
        %630 = vmatpush.msra.mxu0 0.0
        %631 = vmatpush.msra.mxu0 0.0
        %632 = vmatpush.msra.mxu0 0.0
        %633 = vmatpush.msra.mxu0 0.0
        %634 = vmatpush.msra.mxu0 0.0
        %635 = vmatpush.msra.mxu0 0.0
        %636 = vmatpush.msra.mxu0 0.0
        %637 = vmatpush.msra.mxu0 0.0
        %638 = vmatpush.msra.mxu0 0.0
        %639 = vmatpush.msra.mxu0 0.0
        %640 = vmatpush.msra.mxu0 0.0
        %641 = vmatpush.msra.mxu0 %v615
        %642 = vmatpush.msra.mxu0 %v614
        %643 = vmatmul.f32.gmra.mxu0 %v622
        %v644 = vpop.f32.mrf.mxu0
        %v645 = vadd.f32 %v618, %v644
        %646 = vmatmul.f32.gmra.mxu0 %v625
        %v647 = vpop.f32.mrf.mxu0
        %v648 = vadd.f32 %v618, %v647
        %649 = vdwg.mxu0
        %v650 = vmax.f32 %v645, 0.0
        %v651 = vmax.f32 %v648, 0.0
        %v652 = vmin.f32 %v650, 6.0
        %v653 = vmin.f32 %v651, 6.0
        %v654 = vld [vmem:[%s6] sm:$0xff]
        %v655 = vld [vmem:[%s6 + $0x8] sm:$0x1]
        %v656 = vperm.slane %v654, 4
        %v657 = vmul.f32 %v652, %v656
        %v658 = vmul.f32 %v653, %v656
        %v659 = vrot.slane %v652, 7
        %v660 = vrot.slane %v653, 7
        %v661 = vsel %vm409, %v659, %v660
        %v662 = vsel %vm409, %v660, %v659
        %v663 = vmul.f32 %v662, %v394
        %v664 = vmul.f32 %v661, %v395
        %665 = vrot.lane.b32.xlu0 %v663, 8
        %v666 = vpop.permute.xlu0 %665
        %667 = vrot.lane.b32.xlu0 %v664, 8
        %v668 = vpop.permute.xlu0 %667
        %v669 = vperm.slane %v654, 0
        %v670 = vmul.f32 %v666, %v669
        %v671 = vmul.f32 %v668, %v669
        %v672 = vadd.f32 %v657, %v670
        %v673 = vadd.f32 %v658, %v671
        %v674 = vperm.slane %v654, 1
        %v675 = vmul.f32 %v663, %v674
        %v676 = vmul.f32 %v664, %v674
        %v677 = vadd.f32 %v672, %v675
        %v678 = vadd.f32 %v673, %v676
        %679 = vrot.lane.b32.xlu0 %v663, 120
        %v680 = vpop.permute.xlu0 %679
        %681 = vrot.lane.b32.xlu0 %v664, 120
        %v682 = vpop.permute.xlu0 %681
        %v683 = vperm.slane %v654, 2
        %v684 = vmul.f32 %v680, %v683
        %v685 = vmul.f32 %v682, %v683
        %v686 = vadd.f32 %v677, %v684
        %v687 = vadd.f32 %v678, %v685
        %688 = vrot.lane.b32.xlu0 %v652, 8
        %v689 = vpop.permute.xlu0 %688
        %690 = vrot.lane.b32.xlu0 %v653, 8
        %v691 = vpop.permute.xlu0 %690
        %v692 = vperm.slane %v654, 3
        %v693 = vmul.f32 %v689, %v692
        %v694 = vmul.f32 %v691, %v692
        %v695 = vadd.f32 %v686, %v693
        %v696 = vadd.f32 %v687, %v694
        %697 = vrot.lane.b32.xlu0 %v652, 120
        %v698 = vpop.permute.xlu0 %697
        %699 = vrot.lane.b32.xlu0 %v653, 120
        %v700 = vpop.permute.xlu0 %699
        %v701 = vperm.slane %v654, 5
        %v702 = vmul.f32 %v698, %v701
        %v703 = vmul.f32 %v700, %v701
        %v704 = vadd.f32 %v695, %v702
        %v705 = vadd.f32 %v696, %v703
        %v706 = vrot.slane %v652, 1
        %v707 = vrot.slane %v653, 1
        %v708 = vsel %vm514, %v706, %v707
        %v709 = vsel %vm514, %v707, %v706
        %v710 = vmul.f32 %v708, %v400
        %v711 = vmul.f32 %v709, %v401
        %712 = vrot.lane.b32.xlu0 %v710, 8
        %v713 = vpop.permute.xlu0 %712
        %714 = vrot.lane.b32.xlu0 %v711, 8
        %v715 = vpop.permute.xlu0 %714
        %v716 = vperm.slane %v654, 6
        %v717 = vmul.f32 %v713, %v716
        %v718 = vmul.f32 %v715, %v716
        %v719 = vadd.f32 %v704, %v717
        %v720 = vadd.f32 %v705, %v718
        %v721 = vperm.slane %v654, 7
        %v722 = vmul.f32 %v710, %v721
        %v723 = vmul.f32 %v711, %v721
        %v724 = vadd.f32 %v719, %v722
        %v725 = vadd.f32 %v720, %v723
        %726 = vrot.lane.b32.xlu0 %v710, 120
        %v727 = vpop.permute.xlu0 %726
        %728 = vrot.lane.b32.xlu0 %v711, 120
        %v729 = vpop.permute.xlu0 %728
        %v730 = vperm.slane %v655, 0
        %v731 = vmul.f32 %v727, %v730
        %v732 = vmul.f32 %v729, %v730
        %v733 = vadd.f32 %v724, %v731
        %v734 = vadd.f32 %v725, %v732
        %v735 = vld [vmem:[%s7] sm:$0x1]
        %v737 = vperm.slane %v735, 0
        %v739 = vadd.f32 %v733, %v737
        %v740 = vadd.f32 %v734, %v737
        %v741 = vmax.f32 %v739, 0.0
        %v742 = vmax.f32 %v740, 0.0
        %v743 = vmin.f32 %v741, 6.0
        %v744 = vmin.f32 %v742, 6.0
        %v745 = vld [vmem:[%s8] sm:$0xff]
        %v746 = vld [vmem:[%s8 + $0x8] sm:$0xff]
        %v747 = vld [vmem:[%s8 + $0x10] sm:$0xff]
        %v748 = vld [vmem:[%s8 + $0x18] sm:$0xff]
        %v749 = vld [vmem:[%s8 + $0x20] sm:$0xff]
        %v750 = vld [vmem:[%s8 + $0x28] sm:$0xff]
        %v751 = vld [vmem:[%s8 + $0x30] sm:$0xff]
        %v752 = vld [vmem:[%s8 + $0x38] sm:$0xff]
        %v753 = vld [vmem:[%s8 + $0x40] sm:$0xff]
        %v754 = vld [vmem:[%s8 + $0x48] sm:$0xff]
        %v755 = vld [vmem:[%s8 + $0x50] sm:$0xff]
        %v756 = vld [vmem:[%s8 + $0x58] sm:$0xff]
        %v757 = vld [vmem:[%s8 + $0x60] sm:$0xff]
        %v758 = vld [vmem:[%s8 + $0x68] sm:$0xff]
        %v759 = vld [vmem:[%s8 + $0x70] sm:$0xff]
        %v760 = vld [vmem:[%s8 + $0x78] sm:$0xff]
        %761 = vmatpush.msra.mxu0 %v760
        %762 = vmatpush.msra.mxu0 %v759
        %763 = vmatpush.msra.mxu0 %v758
        %764 = vmatpush.msra.mxu0 %v757
        %765 = vmatpush.msra.mxu0 %v756
        %766 = vmatpush.msra.mxu0 %v755
        %767 = vmatpush.msra.mxu0 %v754
        %768 = vmatpush.msra.mxu0 %v753
        %769 = vmatpush.msra.mxu0 %v752
        %770 = vmatpush.msra.mxu0 %v751
        %771 = vmatpush.msra.mxu0 %v750
        %772 = vmatpush.msra.mxu0 %v749
        %773 = vmatpush.msra.mxu0 %v748
        %774 = vmatpush.msra.mxu0 %v747
        %775 = vmatpush.msra.mxu0 %v746
        %776 = vmatpush.msra.mxu0 %v745
        %777 = vmatmul.f32.gmra.mxu0 %v743
        %v778 = vpop.f32.mrf.mxu0
        %v779 = vadd.f32 0.0, %v778
        %780 = vmatmul.f32.gmra.mxu0 %v744
        %v781 = vpop.f32.mrf.mxu0
        %v782 = vadd.f32 0.0, %v781
        %783 = vdwg.mxu0
        %v784 = vld [vmem:[%s9] sm:$0xff]
        %v785 = vld [vmem:[%s9 + $0x8] sm:$0xff]
        %v786 = vld [vmem:[%s10] sm:$0x1]
        %v788 = vperm.slane %v786, 0
        %v791 = vsel %vm620, %v779, 0
        %v794 = vsel %vm620, %v782, 0
        %796 = vmatpush.msra.mxu0 0.0
        %797 = vmatpush.msra.mxu0 0.0
        %798 = vmatpush.msra.mxu0 0.0
        %799 = vmatpush.msra.mxu0 0.0
        %800 = vmatpush.msra.mxu0 0.0
        %801 = vmatpush.msra.mxu0 0.0
        %802 = vmatpush.msra.mxu0 0.0
        %803 = vmatpush.msra.mxu0 0.0
        %804 = vmatpush.msra.mxu0 0.0
        %805 = vmatpush.msra.mxu0 0.0
        %806 = vmatpush.msra.mxu0 0.0
        %807 = vmatpush.msra.mxu0 0.0
        %808 = vmatpush.msra.mxu0 0.0
        %809 = vmatpush.msra.mxu0 0.0
        %810 = vmatpush.msra.mxu0 %v785
        %811 = vmatpush.msra.mxu0 %v784
        %812 = vmatmul.f32.gmra.mxu0 %v791
        %v813 = vpop.f32.mrf.mxu0
        %v814 = vadd.f32 %v788, %v813
        %815 = vmatmul.f32.gmra.mxu0 %v794
        %v816 = vpop.f32.mrf.mxu0
        %v817 = vadd.f32 %v788, %v816
        %818 = vdwg.mxu0
        %819 = vst [vmem:[%s379] sm:$0xff] %v814
        %820 = vst [vmem:[%s379 + $0x8] sm:$0xff] %v817
        %s821 = sand.u32 %s269, 1
        %s822 = scalar_lea.sflag [#allocation3], %s821
        %s823 = sand.u32 %s269, 1
        %s824 = smul.addr %s823, 16
        %s825 = scalar_lea.vmem [#allocation2], %s824
        // Predicated region
        $region65: #{tpu_custom_call.1} parent=63 // pred_check
          %p826 = pneg %p279
        $region66: #{tpu_custom_call.1} parent=63 // pred_check_branch
          %828 = sbr.rel (%p826) target = $region68
        $region67: #{tpu_custom_call.1} parent=63 // pred_region
          %830 = vsyncadd %s822, 0
          %s831 = smul.addr %s25, 2
          %s832 = smul.addr %s831, 8
          %s833 = scalar_lea.hbm %s11, %s832
          %s834 = sshll.u32 %s825, 4
          %s835 = int_to_ptr.vmem [resolvable:$true] %s834
          %s836 = sshll.u32 %s833, 4
          %s837 = int_to_ptr.hbm [resolvable:$true] %s836
          %842 = dma.vmem_to_hbm [thread:$0]  %s835, 256, %s837, %s822, 128, 128, 8
        $region68: #{tpu_custom_call.1} parent=63 // pred_fallthru
          _
      $region64: #{tpu_custom_call.1} parent=5 // pred_fallthru
        _
      %p843 = scmp.le.s32.totalorder 2, %s20
      // Predicated region
      $region69: #{tpu_custom_call.1} parent=5 // pred_check
        %p844 = pneg %p843
      $region70: #{tpu_custom_call.1} parent=5 // pred_check_branch
        %846 = sbr.rel (%p844) target = $region72
      $region71: #{tpu_custom_call.1} parent=5 // pred_region
        %s847 = ssub.s32 %s20, 2
        // Predicated region
        $region73: #{tpu_custom_call.1} parent=71 // pred_check
          %p848 = pneg %p285
        $region74: #{tpu_custom_call.1} parent=71 // pred_check_branch
          %850 = sbr.rel (%p848) target = $region76
        $region75: #{tpu_custom_call.1} parent=71 // pred_region
          %s851 = sand.u32 %s270, 1
          %s852 = scalar_lea.sflag [#allocation3], %s851
          %s853 = sand.u32 %s270, 1
          %s854 = smul.addr %s853, 16
          %s855 = scalar_lea.vmem [#allocation2], %s854
          %857 = dma.done %s852, 256
        $region76: #{tpu_custom_call.1} parent=71 // pred_fallthru
          _
      $region72: #{tpu_custom_call.1} parent=5 // pred_fallthru
        _
    $region6: #{tpu_custom_call.1} parent=1 // loop_footer
      %s24 = sadd.s32 1, %s20
    $region7: #{tpu_custom_call.1} parent=1 // loop_footer_branch
      %19 = sbr.rel target = $region3
    $region8: #{tpu_custom_call.1} parent=1 // loop_exit
      _
    %858 = vsyncpa [#allocation3], 1
    %s859 = scalar_lea.sflag [#allocation3], 1
    %860 = vsyncpa %s859, 1

</llo_original>
